<compile_context>
chip_gen: v5e
topology: v5e:2x2
jax: 0.10.0
libtpu: 0.0.40
codegen_flags: <defaults>
</compile_context>

<pallas_src>
import functools

import jax
import jax.numpy as jnp
from jax.experimental import pallas as pl
from jax.experimental.pallas import tpu as pltpu


def hswish(x):
    # x * relu6(x + 3) / 6
    return x * jnp.clip(x + 3.0, 0.0, 6.0) * (1.0 / 6.0)


# ---------------- fused backbone-stem + head-conv + global-pool kernel ----
def fused_spatial_kernel(x_ref, swt_ref, ssc_ref, sbi_ref,
                         w1t_ref, s1_ref, b1_ref, o_ref, acc_ref, *, inv_hw):
    # Grid: (batch n [parallel], hw-tile t [arbitrary]).
    # x_ref: (1, C_img, THW) f32 -- one batch element, one HW tile, HW on the
    # lane axis.  acc_ref: (width0, 1) f32 pooled-sum accumulator, resident
    # across the HW grid axis.
    t = pl.program_id(1)

    @pl.when(t == 0)
    def _():
        acc_ref[...] = jnp.zeros_like(acc_ref)

    x = x_ref[0]                                   # (C_img, THW)
    wt = swt_ref[...]                              # (C_back, C_img)

    # Backbone stem 1x1 conv: contraction K = C_img is tiny, so keep it off
    # the MXU and do unrolled VPU multiply-adds (outer-product accumulation).
    c_img = x.shape[0]
    stem = wt[:, 0:1] * x[0:1, :]                  # (C_back, THW)
    for k in range(1, c_img):                      # static unroll, C_img small
        stem = stem + wt[:, k:k + 1] * x[k:k + 1, :]
    s = hswish(stem * ssc_ref[...] + sbi_ref[...])  # folded BatchNorm2d + hswish

    # ClsHead ConvLayer(in_channels, width0, 1, norm='bn2d', act='hswish'):
    # bf16 operands on the MXU, f32 accumulation; channels-on-sublanes layout
    # keeps the HW=lane axis dense for every vreg.
    h = jnp.dot(w1t_ref[...], s.astype(jnp.bfloat16),
                preferred_element_type=jnp.float32)        # (width0, THW)
    h = hswish(h * s1_ref[...] + b1_ref[...])               # folded BN + hswish

    # nn.AdaptiveAvgPool2d(1): partial sum over this HW tile (lane axis).
    acc_ref[...] += jnp.sum(h, axis=1, keepdims=True)

    @pl.when(t == pl.num_programs(1) - 1)
    def _():
        o_ref[0] = (acc_ref[...] * inv_hw).astype(o_ref.dtype)   # (width0, 1)


# --------------------- batched post-pool tail kernel ----------------------
def tail_kernel(p_ref, w2_ref, g_ref, be_ref, w3_ref, b3_ref, o_ref):
    p = p_ref[...]                                           # (N, width0)

    # LinearLayer(width0, width1, bias=False, norm='ln', act='hswish')
    z = jnp.dot(p, w2_ref[...], preferred_element_type=jnp.float32)
    mu = jnp.mean(z, axis=-1, keepdims=True)
    var = jnp.mean((z - mu) ** 2, axis=-1, keepdims=True)
    z = (z - mu) * jax.lax.rsqrt(var + 1e-5)
    z = z * g_ref[...] + be_ref[...]
    z = hswish(z)

    # LinearLayer(width1, n_classes, bias=True, dropout=0.0) -> logits
    # (dropout is identity at inference / p=0.0)
    o_ref[...] = (jnp.dot(z, w3_ref[...], preferred_element_type=jnp.float32)
                  + b3_ref[...]).astype(o_ref.dtype)


# ------------------------------ wrappers ---------------------------------
def _const_spec(shape, grid_rank):
    # Constant-index (grid-invariant) full-array block: DMA'd once, never
    # re-fetched across grid steps.
    zeros = (0,) * len(shape)
    if grid_rank == 1:
        return pl.BlockSpec(shape, lambda i, _z=zeros: _z)
    return pl.BlockSpec(shape, lambda i, j, _z=zeros: _z)


def _pick_hw_tile(hw):
    # Largest lane-dense tile (multiple of 128) that divides HW; otherwise
    # take the whole spatial extent in one block.
    for t in (2048, 1024, 512, 256, 128):
        if t <= hw and hw % t == 0:
            return t
    return hw


def run_fused_spatial(x_ncl, stem_wt, stem_scale, stem_bias, w1t, s1, b1):
    N, C_img, HW = x_ncl.shape
    width0 = w1t.shape[0]
    thw = _pick_hw_tile(HW)
    n_hw = HW // thw

    kernel = functools.partial(fused_spatial_kernel, inv_hw=1.0 / HW)
    pooled = pl.pallas_call(
        kernel,
        out_shape=jax.ShapeDtypeStruct((N, width0, 1), jnp.float32),
        grid_spec=pltpu.PrefetchScalarGridSpec(
            num_scalar_prefetch=0,
            grid=(N, n_hw),
            in_specs=[
                pl.BlockSpec((1, C_img, thw), lambda n, t: (n, 0, t)),
                _const_spec(stem_wt.shape, 2),
                _const_spec(stem_scale.shape, 2),
                _const_spec(stem_bias.shape, 2),
                _const_spec(w1t.shape, 2),
                _const_spec(s1.shape, 2),
                _const_spec(b1.shape, 2),
            ],
            # Same output block across the HW axis -> resident accumulator
            # output, only flushed when the batch index advances.
            out_specs=pl.BlockSpec((1, width0, 1), lambda n, t: (n, 0, 0)),
            scratch_shapes=[pltpu.VMEM((width0, 1), jnp.float32)],
        ),
        compiler_params=pltpu.CompilerParams(
            # batch axis parallel -> shards across the 2 TensorCores on v7x;
            # HW reduction axis must stay "arbitrary".
            dimension_semantics=("parallel", "arbitrary"),
            vmem_limit_bytes=32 * 1024 * 1024),
    )(x_ncl, stem_wt, stem_scale, stem_bias, w1t, s1, b1)
    return pooled.reshape(N, width0)


def run_tail(pooled, w2, ln_g, ln_b, w3, b3):
    N, width0 = pooled.shape
    n_classes = w3.shape[1]
    return pl.pallas_call(
        tail_kernel,
        out_shape=jax.ShapeDtypeStruct((N, n_classes), jnp.float32),
        grid_spec=pltpu.PrefetchScalarGridSpec(
            num_scalar_prefetch=0,
            grid=(1,),
            in_specs=[
                _const_spec(pooled.shape, 1),
                _const_spec(w2.shape, 1),
                _const_spec(ln_g.shape, 1),
                _const_spec(ln_b.shape, 1),
                _const_spec(w3.shape, 1),
                _const_spec(b3.shape, 1),
            ],
            out_specs=pl.BlockSpec((N, n_classes), lambda i: (0, 0)),
        ),
        compiler_params=pltpu.CompilerParams(
            vmem_limit_bytes=32 * 1024 * 1024),
    )(pooled, w2, ln_g, ln_b, w3, b3)


def etp_cls_forward(x_nchw, params):
    N, C, H, W = x_nchw.shape
    # NCHW -> (N, C, H*W): pure reshape (no transpose pass over HBM); the
    # spatial axis lands on the lane axis.
    x_ncl = x_nchw.reshape(N, C, H * W)

    # Kernel-layout parameter plumbing (tiny, one-time, outside the kernels).
    stem_wt = jnp.transpose(params["stem_w"])                    # (C_back, C_img)
    stem_scale = params["stem_scale"][:, None]                   # (C_back, 1)
    stem_bias = params["stem_bias"][:, None]                     # (C_back, 1)
    w1t = jnp.transpose(params["head_w1"]).astype(jnp.bfloat16)  # (width0, C_back)
    s1 = params["head_s1"][:, None]                              # (width0, 1)
    b1 = params["head_b1"][:, None]                              # (width0, 1)

    # backbone + ClsHead conv/pool, fused (feed_dict['stage_final'] never
    # round-trips to HBM; only the pooled (N, width0) slab comes out).
    pooled = run_fused_spatial(x_ncl, stem_wt, stem_scale, stem_bias,
                               w1t, s1, b1)

    # ClsHead post-pool tail, batched over N in a single launch.
    ln_g = params["head_ln_g"][None, :]                          # (1, width1)
    ln_b = params["head_ln_b"][None, :]
    b3 = params["head_b3"][None, :]                              # (1, n_classes)
    return run_tail(pooled, params["head_w2"], ln_g, ln_b,
                    params["head_w3"], b3)


# --------------------------- pure-JAX reference ---------------------------
def reference_forward(x_nchw, params):
    HI = jax.lax.Precision.HIGHEST
    N, C, H, W = x_nchw.shape
    x = jnp.transpose(x_nchw.reshape(N, C, H * W), (0, 2, 1))    # (N, HW, C)
    s = jnp.dot(x, params["stem_w"], precision=HI)
    s = hswish(s * params["stem_scale"] + params["stem_bias"])
    # Match the kernel's dtype policy: bf16 operands, f32 accumulation.
    h = jnp.dot(s.astype(jnp.bfloat16),
                params["head_w1"].astype(jnp.bfloat16),
                preferred_element_type=jnp.float32)
    h = hswish(h * params["head_s1"] + params["head_b1"])
    pooled = jnp.mean(h, axis=1)                                 # (N, width0)
    z = jnp.dot(pooled, params["head_w2"], precision=HI)
    mu = jnp.mean(z, axis=-1, keepdims=True)
    var = jnp.mean((z - mu) ** 2, axis=-1, keepdims=True)
    z = (z - mu) * jax.lax.rsqrt(var + 1e-5)
    z = z * params["head_ln_g"] + params["head_ln_b"]
    z = hswish(z)
    return jnp.dot(z, params["head_w3"], precision=HI) + params["head_b3"]


def make_params(key, c_img, c_back, width0, width1, n_classes):
    ks = jax.random.split(key, 11)
    p = {}
    # backbone stem: 1x1 conv (c_img -> c_back) + folded BN
    p["stem_w"] = jax.random.normal(ks[0], (c_img, c_back), jnp.float32) * 0.2
    p["stem_scale"] = 1.0 + 0.05 * jax.random.normal(ks[1], (c_back,), jnp.float32)
    p["stem_bias"] = 0.05 * jax.random.normal(ks[2], (c_back,), jnp.float32)
    # head conv 1x1 (c_back -> width0) + folded BN
    p["head_w1"] = jax.random.normal(ks[3], (c_back, width0), jnp.float32) * 0.2
    p["head_s1"] = 1.0 + 0.05 * jax.random.normal(ks[4], (width0,), jnp.float32)
    p["head_b1"] = 0.05 * jax.random.normal(ks[5], (width0,), jnp.float32)
    # linear width0 -> width1 (no bias) + LayerNorm(width1)
    p["head_w2"] = jax.random.normal(ks[6], (width0, width1), jnp.float32) * 0.2
    p["head_ln_g"] = 1.0 + 0.05 * jax.random.normal(ks[7], (width1,), jnp.float32)
    p["head_ln_b"] = 0.05 * jax.random.normal(ks[8], (width1,), jnp.float32)
    # linear width1 -> n_classes (bias)
    p["head_w3"] = jax.random.normal(ks[9], (width1, n_classes), jnp.float32) * 0.2
    p["head_b3"] = 0.05 * jax.random.normal(ks[10], (n_classes,), jnp.float32)
    return p


if __name__ == "__main__":
    # small shapes: batch=2, image channels=4, spatial=16x16
    N, C_IMG, H, W = 2, 4, 16, 16
    C_BACK = 32              # backbone output channels == ClsHead in_channels
    WIDTH0, WIDTH1 = 64, 32  # ClsHead width_list
    N_CLASSES = 10

    key = jax.random.PRNGKey(0)
    kx, kp = jax.random.split(key)
    x = jax.random.normal(kx, (N, C_IMG, H, W), jnp.float32)
    params = make_params(kp, C_IMG, C_BACK, WIDTH0, WIDTH1, N_CLASSES)

    out = jax.block_until_ready(etp_cls_forward(x, params))
    ref = reference_forward(x, params)

    assert out.shape == (N, N_CLASSES)
    assert jnp.allclose(out, ref, atol=1e-2, rtol=1e-2), "mismatch vs reference"

    print("KERNEL_OK")
</pallas_src>

<mosaic_0001>
module attributes {stable_mosaic.version = 11 : i64} {
  func.func @fused_spatial_kernel(%arg0: i32, %arg1: i32, %arg2: memref<1x4x256xf32, #tpu.memory_space<vmem>>, %arg3: memref<32x4xf32, #tpu.memory_space<vmem>>, %arg4: memref<32x1xf32, #tpu.memory_space<vmem>>, %arg5: memref<32x1xf32, #tpu.memory_space<vmem>>, %arg6: memref<64x32xbf16, #tpu.memory_space<vmem>>, %arg7: memref<64x1xf32, #tpu.memory_space<vmem>>, %arg8: memref<64x1xf32, #tpu.memory_space<vmem>>, %arg9: memref<1x64x1xf32, #tpu.memory_space<vmem>>, %arg10: memref<64x1xf32, #tpu.memory_space<vmem>>) attributes {dimension_semantics = [#tpu.dimension_semantics<parallel>, #tpu.dimension_semantics<arbitrary>], iteration_bounds = array<i64: 2, 1>, scalar_prefetch = 0 : i64, scratch_operands = 1 : i64, tpu.core_type = #tpu.core_type<tc>, window_params = [{transform_indices = @transform_0, window_bounds = array<i64: 1, 4, 256>}, {pipeline_mode = #tpu.pipeline_mode<synchronous>, transform_indices = @transform_1, window_bounds = array<i64: 32, 4>}, {pipeline_mode = #tpu.pipeline_mode<synchronous>, transform_indices = @transform_2, window_bounds = array<i64: 32, 1>}, {pipeline_mode = #tpu.pipeline_mode<synchronous>, transform_indices = @transform_3, window_bounds = array<i64: 32, 1>}, {pipeline_mode = #tpu.pipeline_mode<synchronous>, transform_indices = @transform_4, window_bounds = array<i64: 64, 32>}, {pipeline_mode = #tpu.pipeline_mode<synchronous>, transform_indices = @transform_5, window_bounds = array<i64: 64, 1>}, {pipeline_mode = #tpu.pipeline_mode<synchronous>, transform_indices = @transform_6, window_bounds = array<i64: 64, 1>}, {transform_indices = @transform_7, window_bounds = array<i64: 1, 64, 1>}]} {
    %c0_i32 = arith.constant 0 : i32
    %0 = arith.cmpi eq, %arg1, %c0_i32 : i32
    %1 = arith.extui %0 : i1 to i32
    %c0_i32_0 = arith.constant 0 : i32
    %2 = arith.cmpi ne, %1, %c0_i32_0 : i32
    scf.if %2 {
      %cst_30 = arith.constant 0.000000e+00 : f32
      %70 = vector.broadcast %cst_30 : f32 to vector<64x1xf32>
      %c0_31 = arith.constant 0 : index
      %c0_32 = arith.constant 0 : index
      %71 = vector.load %arg10[%c0_31, %c0_32] : memref<64x1xf32, #tpu.memory_space<vmem>>, vector<64x1xf32>
      tpu.vector_store %arg10[%c0_31, %c0_32], %70 {strides = array<i32>} : memref<64x1xf32, #tpu.memory_space<vmem>>, vector<64x1xf32>,
    } else {
    }
    %c0 = arith.constant 0 : index
    %c0_1 = arith.constant 0 : index
    %c0_2 = arith.constant 0 : index
    %3 = vector.load %arg2[%c0, %c0_1, %c0_2] : memref<1x4x256xf32, #tpu.memory_space<vmem>>, vector<1x4x256xf32>
    %4 = vector.shape_cast %3 : vector<1x4x256xf32> to vector<4x256xf32>
    %c0_3 = arith.constant 0 : index
    %c0_4 = arith.constant 0 : index
    %5 = vector.load %arg3[%c0_3, %c0_4] : memref<32x4xf32, #tpu.memory_space<vmem>>, vector<32x4xf32>
    %6 = vector.extract_strided_slice %5 {offsets = [0, 0], sizes = [32, 1], strides = [1, 1]} : vector<32x4xf32> to vector<32x1xf32>
    %7 = vector.extract_strided_slice %4 {offsets = [0, 0], sizes = [1, 256], strides = [1, 1]} : vector<4x256xf32> to vector<1x256xf32>
    %8 = vector.broadcast %6 : vector<32x1xf32> to vector<32x256xf32>
    %9 = vector.broadcast %7 : vector<1x256xf32> to vector<32x256xf32>
    %10 = arith.mulf %8, %9 : vector<32x256xf32>
    %11 = vector.extract_strided_slice %5 {offsets = [0, 1], sizes = [32, 1], strides = [1, 1]} : vector<32x4xf32> to vector<32x1xf32>
    %12 = vector.extract_strided_slice %4 {offsets = [1, 0], sizes = [1, 256], strides = [1, 1]} : vector<4x256xf32> to vector<1x256xf32>
    %13 = vector.broadcast %11 : vector<32x1xf32> to vector<32x256xf32>
    %14 = vector.broadcast %12 : vector<1x256xf32> to vector<32x256xf32>
    %15 = arith.mulf %13, %14 : vector<32x256xf32>
    %16 = arith.addf %10, %15 : vector<32x256xf32>
    %17 = vector.extract_strided_slice %5 {offsets = [0, 2], sizes = [32, 1], strides = [1, 1]} : vector<32x4xf32> to vector<32x1xf32>
    %18 = vector.extract_strided_slice %4 {offsets = [2, 0], sizes = [1, 256], strides = [1, 1]} : vector<4x256xf32> to vector<1x256xf32>
    %19 = vector.broadcast %17 : vector<32x1xf32> to vector<32x256xf32>
    %20 = vector.broadcast %18 : vector<1x256xf32> to vector<32x256xf32>
    %21 = arith.mulf %19, %20 : vector<32x256xf32>
    %22 = arith.addf %16, %21 : vector<32x256xf32>
    %23 = vector.extract_strided_slice %5 {offsets = [0, 3], sizes = [32, 1], strides = [1, 1]} : vector<32x4xf32> to vector<32x1xf32>
    %24 = vector.extract_strided_slice %4 {offsets = [3, 0], sizes = [1, 256], strides = [1, 1]} : vector<4x256xf32> to vector<1x256xf32>
    %25 = vector.broadcast %23 : vector<32x1xf32> to vector<32x256xf32>
    %26 = vector.broadcast %24 : vector<1x256xf32> to vector<32x256xf32>
    %27 = arith.mulf %25, %26 : vector<32x256xf32>
    %28 = arith.addf %22, %27 : vector<32x256xf32>
    %c0_5 = arith.constant 0 : index
    %c0_6 = arith.constant 0 : index
    %29 = vector.load %arg4[%c0_5, %c0_6] : memref<32x1xf32, #tpu.memory_space<vmem>>, vector<32x1xf32>
    %30 = vector.broadcast %29 : vector<32x1xf32> to vector<32x256xf32>
    %31 = arith.mulf %28, %30 : vector<32x256xf32>
    %c0_7 = arith.constant 0 : index
    %c0_8 = arith.constant 0 : index
    %32 = vector.load %arg5[%c0_7, %c0_8] : memref<32x1xf32, #tpu.memory_space<vmem>>, vector<32x1xf32>
    %33 = vector.broadcast %32 : vector<32x1xf32> to vector<32x256xf32>
    %34 = arith.addf %31, %33 : vector<32x256xf32>
    %cst = arith.constant 3.000000e+00 : f32
    %35 = vector.broadcast %cst : f32 to vector<32x256xf32>
    %36 = arith.addf %34, %35 : vector<32x256xf32>
    %cst_9 = arith.constant 0.000000e+00 : f32
    %cst_10 = arith.constant 6.000000e+00 : f32
    %37 = vector.broadcast %cst_9 : f32 to vector<32x256xf32>
    %38 = arith.maximumf %37, %36 : vector<32x256xf32>
    %39 = vector.broadcast %cst_10 : f32 to vector<32x256xf32>
    %40 = arith.minimumf %39, %38 : vector<32x256xf32>
    %41 = arith.mulf %34, %40 : vector<32x256xf32>
    %cst_11 = arith.constant 0.166666672 : f32
    %42 = vector.broadcast %cst_11 : f32 to vector<32x256xf32>
    %43 = arith.mulf %41, %42 : vector<32x256xf32>
    %c0_12 = arith.constant 0 : index
    %c0_13 = arith.constant 0 : index
    %44 = vector.load %arg6[%c0_12, %c0_13] : memref<64x32xbf16, #tpu.memory_space<vmem>>, vector<64x32xbf16>
    %45 = arith.truncf %43 : vector<32x256xf32> to vector<32x256xbf16>
    %cst_14 = arith.constant dense<0.000000e+00> : vector<64x256xf32>
    %46 = tpu.matmul %44, %45, %cst_14 {dimension_numbers = #tpu.dot_dimension_numbers<[1], [0], [0], [1], [0, 0, 1, 1], [], []>} : vector<64x32xbf16>, vector<32x256xbf16>, vector<64x256xf32> -> vector<64x256xf32>
    %c0_15 = arith.constant 0 : index
    %c0_16 = arith.constant 0 : index
    %47 = vector.load %arg7[%c0_15, %c0_16] : memref<64x1xf32, #tpu.memory_space<vmem>>, vector<64x1xf32>
    %48 = vector.broadcast %47 : vector<64x1xf32> to vector<64x256xf32>
    %49 = arith.mulf %46, %48 : vector<64x256xf32>
    %c0_17 = arith.constant 0 : index
    %c0_18 = arith.constant 0 : index
    %50 = vector.load %arg8[%c0_17, %c0_18] : memref<64x1xf32, #tpu.memory_space<vmem>>, vector<64x1xf32>
    %51 = vector.broadcast %50 : vector<64x1xf32> to vector<64x256xf32>
    %52 = arith.addf %49, %51 : vector<64x256xf32>
    %cst_19 = arith.constant 3.000000e+00 : f32
    %53 = vector.broadcast %cst_19 : f32 to vector<64x256xf32>
    %54 = arith.addf %52, %53 : vector<64x256xf32>
    %cst_20 = arith.constant 0.000000e+00 : f32
    %cst_21 = arith.constant 6.000000e+00 : f32
    %55 = vector.broadcast %cst_20 : f32 to vector<64x256xf32>
    %56 = arith.maximumf %55, %54 : vector<64x256xf32>
    %57 = vector.broadcast %cst_21 : f32 to vector<64x256xf32>
    %58 = arith.minimumf %57, %56 : vector<64x256xf32>
    %59 = arith.mulf %52, %58 : vector<64x256xf32>
    %cst_22 = arith.constant 0.166666672 : f32
    %60 = vector.broadcast %cst_22 : f32 to vector<64x256xf32>
    %61 = arith.mulf %59, %60 : vector<64x256xf32>
    %c0_23 = arith.constant 0 : index
    %c0_24 = arith.constant 0 : index
    %62 = vector.load %arg10[%c0_23, %c0_24] : memref<64x1xf32, #tpu.memory_space<vmem>>, vector<64x1xf32>
    %cst_25 = arith.constant dense<0.000000e+00> : vector<64xf32>
    %63 = vector.multi_reduction <add>, %61, %cst_25 [1] : vector<64x256xf32> to vector<64xf32>
    %64 = vector.shape_cast %63 : vector<64xf32> to vector<64x1xf32>
    %65 = arith.addf %62, %64 : vector<64x1xf32>
    %c0_26 = arith.constant 0 : index
    %c0_27 = arith.constant 0 : index
    %66 = vector.load %arg10[%c0_26, %c0_27] : memref<64x1xf32, #tpu.memory_space<vmem>>, vector<64x1xf32>
    tpu.vector_store %arg10[%c0_26, %c0_27], %65 {strides = array<i32>} : memref<64x1xf32, #tpu.memory_space<vmem>>, vector<64x1xf32>,
    %c0_i32_28 = arith.constant 0 : i32
    %67 = arith.cmpi eq, %arg1, %c0_i32_28 : i32
    %68 = arith.extui %67 : i1 to i32
    %c0_i32_29 = arith.constant 0 : i32
    %69 = arith.cmpi ne, %68, %c0_i32_29 : i32
    scf.if %69 {
      %c0_30 = arith.constant 0 : index
      %c0_31 = arith.constant 0 : index
      %70 = vector.load %arg10[%c0_30, %c0_31] : memref<64x1xf32, #tpu.memory_space<vmem>>, vector<64x1xf32>
      %cst_32 = arith.constant 3.906250e-03 : f32
      %71 = vector.broadcast %cst_32 : f32 to vector<64x1xf32>
      %72 = arith.mulf %70, %71 : vector<64x1xf32>
      %c0_33 = arith.constant 0 : index
      %c0_34 = arith.constant 0 : index
      %c0_35 = arith.constant 0 : index
      %73 = vector.load %arg9[%c0_33, %c0_34, %c0_35] : memref<1x64x1xf32, #tpu.memory_space<vmem>>, vector<1x64x1xf32>
      %74 = vector.shape_cast %73 : vector<1x64x1xf32> to vector<64x1xf32>
      %75 = vector.shape_cast %72 : vector<64x1xf32> to vector<1x64x1xf32>
      tpu.vector_store %arg9[%c0_33, %c0_34, %c0_35], %75 {strides = array<i32>} : memref<1x64x1xf32, #tpu.memory_space<vmem>>, vector<1x64x1xf32>,
    } else {
    }
    return
  }
  func.func @transform_0(%arg0: i32, %arg1: i32) -> (i32, i32, i32) {
    %c0_i32 = arith.constant 0 : i32
    %c0_i32_0 = arith.constant 0 : i32
    return %arg0, %c0_i32, %arg1 : i32, i32, i32
  }
  func.func @transform_1(%arg0: i32, %arg1: i32) -> (i32, i32) {
    %c0_i32 = arith.constant 0 : i32
    %c0_i32_0 = arith.constant 0 : i32
    %c0_i32_1 = arith.constant 0 : i32
    return %c0_i32, %c0_i32_0 : i32, i32
  }
  func.func @transform_2(%arg0: i32, %arg1: i32) -> (i32, i32) {
    %c0_i32 = arith.constant 0 : i32
    %c0_i32_0 = arith.constant 0 : i32
    %c0_i32_1 = arith.constant 0 : i32
    return %c0_i32, %c0_i32_0 : i32, i32
  }
  func.func @transform_3(%arg0: i32, %arg1: i32) -> (i32, i32) {
    %c0_i32 = arith.constant 0 : i32
    %c0_i32_0 = arith.constant 0 : i32
    %c0_i32_1 = arith.constant 0 : i32
    return %c0_i32, %c0_i32_0 : i32, i32
  }
  func.func @transform_4(%arg0: i32, %arg1: i32) -> (i32, i32) {
    %c0_i32 = arith.constant 0 : i32
    %c0_i32_0 = arith.constant 0 : i32
    %c0_i32_1 = arith.constant 0 : i32
    return %c0_i32, %c0_i32_0 : i32, i32
  }
  func.func @transform_5(%arg0: i32, %arg1: i32) -> (i32, i32) {
    %c0_i32 = arith.constant 0 : i32
    %c0_i32_0 = arith.constant 0 : i32
    %c0_i32_1 = arith.constant 0 : i32
    return %c0_i32, %c0_i32_0 : i32, i32
  }
  func.func @transform_6(%arg0: i32, %arg1: i32) -> (i32, i32) {
    %c0_i32 = arith.constant 0 : i32
    %c0_i32_0 = arith.constant 0 : i32
    %c0_i32_1 = arith.constant 0 : i32
    return %c0_i32, %c0_i32_0 : i32, i32
  }
  func.func @transform_7(%arg0: i32, %arg1: i32) -> (i32, i32, i32) {
    %c0_i32 = arith.constant 0 : i32
    %c0_i32_0 = arith.constant 0 : i32
    %c0_i32_1 = arith.constant 0 : i32
    return %arg0, %c0_i32, %c0_i32_0 : i32, i32, i32
  }
}

</mosaic_0001>

<llo_original>
// kernel: tpu_custom_call.1
$region0: #{tpu_custom_call.1}
  #allocation0 [shape = 'u32[]', space=smem, size = 0x4, offset = 0x4, fixed_abs, tag = 'smem constant byte address 0x4 - core index']
  #allocation1 [shape = 'u32[72,128]{1,0:T(1,128)}', space=vmem, size = 0x9000, scoped, tag = 'internal scratch']
  #allocation2 [shape = 'f32[64,1]{1,0:T(8,128)}', space=vmem, size = 0x8000, scoped, tag = 'scratch operand']
  %s0 = inlined_call_operand.vmem [shape: f32[2,4,256], index: 0, kind: input, shape index: {}]
  %s1 = inlined_call_operand.vmem [shape: f32[32,4], index: 1, kind: input, shape index: {}]
  %s2 = inlined_call_operand.vmem [shape: f32[32,1], index: 2, kind: input, shape index: {}]
  %s3 = inlined_call_operand.vmem [shape: f32[32,1], index: 3, kind: input, shape index: {}]
  %s4 = inlined_call_operand.vmem [shape: bf16[64,32], index: 4, kind: input, shape index: {}]
  %s5 = inlined_call_operand.vmem [shape: f32[64,1], index: 5, kind: input, shape index: {}]
  %s6 = inlined_call_operand.vmem [shape: f32[64,1], index: 6, kind: input, shape index: {}]
  %s7 = inlined_call_operand.vmem [shape: f32[2,64,1], index: 7, kind: output, shape index: {}]
  %s8 = sld [smem:[#allocation0]]
  $region69: #{tpu_custom_call.1} parent=0
    _
  %s10 = ssub.s32 1, %s8
  %s11 = scalar_select 0, %s10, %s8
  loop: start=0, step=1, limit=4
  $region2: #{tpu_custom_call.1} parent=0 // loop_pre_header
    _
  $region3: #{tpu_custom_call.1} parent=0 // loop_header
    %s13 = sphi 0, %s17
    %p14 = scmp.ge.s32.totalorder %s13, 4
    %s20 = sphi 0, %s32
    %s21 = sphi 0, %s28
    %s22 = sphi 0, %s20
    %s23 = sphi 0, %s21
    %s24 = sphi 0, %s22
    %s25 = sphi 0, %s23
    %s37 = sphi 0, %s39
    %s40 = sphi 0, %s37
    %s41 = sphi 0, %s40
    %s57 = sphi 0, %s41
    %s61 = sphi 0, %s61
    %s63 = sphi 0, %s61
    %s64 = sphi 0, %s63
    %s78 = sphi 0, %s64
    %s82 = sphi 0, %s82
    %s84 = sphi 0, %s82
    %s85 = sphi 0, %s84
    %s99 = sphi 0, %s85
    %s103 = sphi 0, %s103
    %s105 = sphi 0, %s103
    %s106 = sphi 0, %s105
    %s120 = sphi 0, %s106
    %s124 = sphi 0, %s124
    %s126 = sphi 0, %s124
    %s127 = sphi 0, %s126
    %s141 = sphi 0, %s127
    %s145 = sphi 0, %s145
    %s147 = sphi 0, %s145
    %s148 = sphi 0, %s147
    %s162 = sphi 0, %s148
    %s166 = sphi 0, %s166
    %s168 = sphi 0, %s166
    %s169 = sphi 0, %s168
    %s183 = sphi 0, %s169
    %s189 = sphi 0, %s191
    %s192 = sphi 0, %s189
    %s193 = sphi 0, %s192
    %s209 = sphi 0, %s193
  $region4: #{tpu_custom_call.1} parent=0 // loop_header_branch
    %16 = sbr.rel (%p14) target = $region8
  $region5: #{tpu_custom_call.1} parent=0 // loop_body
    %s18 = ssub.s32 %s13, 1
    %s19 = ssub.s32 %s13, 2
    %s26 = sadd.s32 1, %s21
    %p27 = scmp.ge.s32.totalorder %s26, 1
    %s28 = scalar_select %p27, 0, %s26
    %s29 = sadd.s32 1, %s20
    %s30 = scalar_select %p27, %s29, %s20
    %p31 = scmp.ge.s32.totalorder %s30, 2
    %s32 = scalar_select %p31, 0, %s30
    %s33 = ssub.s32 %s20, %s32
    %s34 = ssub.s32 %s21, %s28
    %s35 = sor.u32 %s33, %s34
    %p36 = scmp.eq.s32.totalorder %s35, 0
    %s38 = sadd.s32 %s37, 1
    %s39 = scalar_select %p36, %s37, %s38
    %p42 = pneg %p36
    %p43 = scmp.eq.s32.totalorder %s13, 1
    %p44 = por %p42, %p43
    %p45 = scmp.ne.s32.totalorder %s37, %s40
    %p46 = scmp.eq.s32.totalorder %s13, 0
    %p47 = por %p45, %p46
    %p48 = scmp.ne.s32.totalorder %s37, %s40
    %p49 = scmp.eq.s32.totalorder %s18, 1
    %p50 = por %p48, %p49
    %p51 = scmp.ne.s32.totalorder %s40, %s41
    %p52 = scmp.eq.s32.totalorder %s18, 0
    %p53 = por %p51, %p52
    %p54 = scmp.ne.s32.totalorder %s40, %s41
    %p55 = scmp.eq.s32.totalorder %s19, 1
    %p56 = por %p54, %p55
    %p58 = scmp.ne.s32.totalorder %s41, %s57
    %p59 = scmp.eq.s32.totalorder %s19, 0
    %p60 = por %p58, %p59
    %s62 = sadd.s32 %s61, 1
    %p65 = scmp.eq.s32.totalorder %s13, 1
    %p66 = scmp.ne.s32.totalorder %s61, %s63
    %p67 = scmp.eq.s32.totalorder %s13, 0
    %p68 = por %p66, %p67
    %p69 = scmp.ne.s32.totalorder %s61, %s63
    %p70 = scmp.eq.s32.totalorder %s18, 1
    %p71 = por %p69, %p70
    %p72 = scmp.ne.s32.totalorder %s63, %s64
    %p73 = scmp.eq.s32.totalorder %s18, 0
    %p74 = por %p72, %p73
    %p75 = scmp.ne.s32.totalorder %s63, %s64
    %p76 = scmp.eq.s32.totalorder %s19, 1
    %p77 = por %p75, %p76
    %p79 = scmp.ne.s32.totalorder %s64, %s78
    %p80 = scmp.eq.s32.totalorder %s19, 0
    %p81 = por %p79, %p80
    %s83 = sadd.s32 %s82, 1
    %p86 = scmp.eq.s32.totalorder %s13, 1
    %p87 = scmp.ne.s32.totalorder %s82, %s84
    %p88 = scmp.eq.s32.totalorder %s13, 0
    %p89 = por %p87, %p88
    %p90 = scmp.ne.s32.totalorder %s82, %s84
    %p91 = scmp.eq.s32.totalorder %s18, 1
    %p92 = por %p90, %p91
    %p93 = scmp.ne.s32.totalorder %s84, %s85
    %p94 = scmp.eq.s32.totalorder %s18, 0
    %p95 = por %p93, %p94
    %p96 = scmp.ne.s32.totalorder %s84, %s85
    %p97 = scmp.eq.s32.totalorder %s19, 1
    %p98 = por %p96, %p97
    %p100 = scmp.ne.s32.totalorder %s85, %s99
    %p101 = scmp.eq.s32.totalorder %s19, 0
    %p102 = por %p100, %p101
    %s104 = sadd.s32 %s103, 1
    %p107 = scmp.eq.s32.totalorder %s13, 1
    %p108 = scmp.ne.s32.totalorder %s103, %s105
    %p109 = scmp.eq.s32.totalorder %s13, 0
    %p110 = por %p108, %p109
    %p111 = scmp.ne.s32.totalorder %s103, %s105
    %p112 = scmp.eq.s32.totalorder %s18, 1
    %p113 = por %p111, %p112
    %p114 = scmp.ne.s32.totalorder %s105, %s106
    %p115 = scmp.eq.s32.totalorder %s18, 0
    %p116 = por %p114, %p115
    %p117 = scmp.ne.s32.totalorder %s105, %s106
    %p118 = scmp.eq.s32.totalorder %s19, 1
    %p119 = por %p117, %p118
    %p121 = scmp.ne.s32.totalorder %s106, %s120
    %p122 = scmp.eq.s32.totalorder %s19, 0
    %p123 = por %p121, %p122
    %s125 = sadd.s32 %s124, 1
    %p128 = scmp.eq.s32.totalorder %s13, 1
    %p129 = scmp.ne.s32.totalorder %s124, %s126
    %p130 = scmp.eq.s32.totalorder %s13, 0
    %p131 = por %p129, %p130
    %p132 = scmp.ne.s32.totalorder %s124, %s126
    %p133 = scmp.eq.s32.totalorder %s18, 1
    %p134 = por %p132, %p133
    %p135 = scmp.ne.s32.totalorder %s126, %s127
    %p136 = scmp.eq.s32.totalorder %s18, 0
    %p137 = por %p135, %p136
    %p138 = scmp.ne.s32.totalorder %s126, %s127
    %p139 = scmp.eq.s32.totalorder %s19, 1
    %p140 = por %p138, %p139
    %p142 = scmp.ne.s32.totalorder %s127, %s141
    %p143 = scmp.eq.s32.totalorder %s19, 0
    %p144 = por %p142, %p143
    %s146 = sadd.s32 %s145, 1
    %p149 = scmp.eq.s32.totalorder %s13, 1
    %p150 = scmp.ne.s32.totalorder %s145, %s147
    %p151 = scmp.eq.s32.totalorder %s13, 0
    %p152 = por %p150, %p151
    %p153 = scmp.ne.s32.totalorder %s145, %s147
    %p154 = scmp.eq.s32.totalorder %s18, 1
    %p155 = por %p153, %p154
    %p156 = scmp.ne.s32.totalorder %s147, %s148
    %p157 = scmp.eq.s32.totalorder %s18, 0
    %p158 = por %p156, %p157
    %p159 = scmp.ne.s32.totalorder %s147, %s148
    %p160 = scmp.eq.s32.totalorder %s19, 1
    %p161 = por %p159, %p160
    %p163 = scmp.ne.s32.totalorder %s148, %s162
    %p164 = scmp.eq.s32.totalorder %s19, 0
    %p165 = por %p163, %p164
    %s167 = sadd.s32 %s166, 1
    %p170 = scmp.eq.s32.totalorder %s13, 1
    %p171 = scmp.ne.s32.totalorder %s166, %s168
    %p172 = scmp.eq.s32.totalorder %s13, 0
    %p173 = por %p171, %p172
    %p174 = scmp.ne.s32.totalorder %s166, %s168
    %p175 = scmp.eq.s32.totalorder %s18, 1
    %p176 = por %p174, %p175
    %p177 = scmp.ne.s32.totalorder %s168, %s169
    %p178 = scmp.eq.s32.totalorder %s18, 0
    %p179 = por %p177, %p178
    %p180 = scmp.ne.s32.totalorder %s168, %s169
    %p181 = scmp.eq.s32.totalorder %s19, 1
    %p182 = por %p180, %p181
    %p184 = scmp.ne.s32.totalorder %s169, %s183
    %p185 = scmp.eq.s32.totalorder %s19, 0
    %p186 = por %p184, %p185
    %s187 = ssub.s32 %s20, %s32
    %p188 = scmp.eq.s32.totalorder %s187, 0
    %s190 = sadd.s32 %s189, 1
    %s191 = scalar_select %p188, %s189, %s190
    %p194 = pneg %p188
    %p195 = scmp.eq.s32.totalorder %s13, 1
    %p196 = por %p194, %p195
    %p197 = scmp.ne.s32.totalorder %s189, %s192
    %p198 = scmp.eq.s32.totalorder %s13, 0
    %p199 = por %p197, %p198
    %p200 = scmp.ne.s32.totalorder %s189, %s192
    %p201 = scmp.eq.s32.totalorder %s18, 1
    %p202 = por %p200, %p201
    %p203 = scmp.ne.s32.totalorder %s192, %s193
    %p204 = scmp.eq.s32.totalorder %s18, 0
    %p205 = por %p203, %p204
    %p206 = scmp.ne.s32.totalorder %s192, %s193
    %p207 = scmp.eq.s32.totalorder %s19, 1
    %p208 = por %p206, %p207
    %p210 = scmp.ne.s32.totalorder %s193, %s209
    %p211 = scmp.eq.s32.totalorder %s19, 0
    %p212 = por %p210, %p211
    %p213 = scmp.le.s32.totalorder 1, %s13
    %p214 = scmp.lt.s32.totalorder %s13, 3
    %p215 = pnand %p213, %p214
    %p216 = pneg %p215
    // Predicated region
    $region9: #{tpu_custom_call.1} parent=5 // pred_check
      _
    $region10: #{tpu_custom_call.1} parent=5 // pred_check_branch
      %218 = sbr.rel (%p215) target = $region12
    $region11: #{tpu_custom_call.1} parent=5 // pred_region
      %s219 = ssub.s32 %s13, 1
      // Predicated region
      $region13: #{tpu_custom_call.1} parent=11 // pred_check
        %p220 = pneg %p74
      $region14: #{tpu_custom_call.1} parent=11 // pred_check_branch
        %222 = sbr.rel (%p220) target = $region16
      $region15: #{tpu_custom_call.1} parent=11 // pred_region
        _
      $region16: #{tpu_custom_call.1} parent=11 // pred_fallthru
        _
      // Predicated region
      $region17: #{tpu_custom_call.1} parent=11 // pred_check
        %p223 = pneg %p95
      $region18: #{tpu_custom_call.1} parent=11 // pred_check_branch
        %225 = sbr.rel (%p223) target = $region20
      $region19: #{tpu_custom_call.1} parent=11 // pred_region
        _
      $region20: #{tpu_custom_call.1} parent=11 // pred_fallthru
        _
      // Predicated region
      $region21: #{tpu_custom_call.1} parent=11 // pred_check
        %p226 = pneg %p116
      $region22: #{tpu_custom_call.1} parent=11 // pred_check_branch
        %228 = sbr.rel (%p226) target = $region24
      $region23: #{tpu_custom_call.1} parent=11 // pred_region
        _
      $region24: #{tpu_custom_call.1} parent=11 // pred_fallthru
        _
      // Predicated region
      $region25: #{tpu_custom_call.1} parent=11 // pred_check
        %p229 = pneg %p137
      $region26: #{tpu_custom_call.1} parent=11 // pred_check_branch
        %231 = sbr.rel (%p229) target = $region28
      $region27: #{tpu_custom_call.1} parent=11 // pred_region
        _
      $region28: #{tpu_custom_call.1} parent=11 // pred_fallthru
        _
      // Predicated region
      $region29: #{tpu_custom_call.1} parent=11 // pred_check
        %p232 = pneg %p158
      $region30: #{tpu_custom_call.1} parent=11 // pred_check_branch
        %234 = sbr.rel (%p232) target = $region32
      $region31: #{tpu_custom_call.1} parent=11 // pred_region
        _
      $region32: #{tpu_custom_call.1} parent=11 // pred_fallthru
        _
      // Predicated region
      $region33: #{tpu_custom_call.1} parent=11 // pred_check
        %p235 = pneg %p179
      $region34: #{tpu_custom_call.1} parent=11 // pred_check_branch
        %237 = sbr.rel (%p235) target = $region36
      $region35: #{tpu_custom_call.1} parent=11 // pred_region
        _
      $region36: #{tpu_custom_call.1} parent=11 // pred_fallthru
        _
    $region12: #{tpu_custom_call.1} parent=5 // pred_fallthru
      _
    %p238 = scmp.lt.s32.totalorder %s13, 2
    // Predicated region
    $region37: #{tpu_custom_call.1} parent=5 // pred_check
      %p239 = pneg %p238
    $region38: #{tpu_custom_call.1} parent=5 // pred_check_branch
      %241 = sbr.rel (%p239) target = $region40
    $region39: #{tpu_custom_call.1} parent=5 // pred_region
      // Predicated region
      $region41: #{tpu_custom_call.1} parent=39 // pred_check
        %p242 = pneg %p47
      $region42: #{tpu_custom_call.1} parent=39 // pred_check_branch
        %244 = sbr.rel (%p242) target = $region44
      $region43: #{tpu_custom_call.1} parent=39 // pred_region
        %s245 = smul.u32 2, %s21
        %p246 = scmp.lt.s32.totalorder %s20, 1
        %s247 = scalar_select %p246, %s20, 1
        %p248 = scmp.lt.s32.totalorder %s245, 1
        %s249 = scalar_select %p248, %s245, 1
        %s250 = smul.addr %s247, 2
        %s251 = sadd.s32 %s249, %s250
        %s252 = smul.addr %s251, 4
        %s253 = scalar_lea.vmem %s0, %s252
        %s254 = smul.u32 2, %s21
      $region44: #{tpu_custom_call.1} parent=39 // pred_fallthru
        _
    $region40: #{tpu_custom_call.1} parent=5 // pred_fallthru
      _
    %p255 = scmp.le.s32.totalorder 1, %s13
    %p256 = scmp.lt.s32.totalorder %s13, 3
    %p257 = pnand %p255, %p256
    %p258 = pneg %p257
    // Predicated region
    $region45: #{tpu_custom_call.1} parent=5 // pred_check
      _
    $region46: #{tpu_custom_call.1} parent=5 // pred_check_branch
      %260 = sbr.rel (%p257) target = $region48
    $region47: #{tpu_custom_call.1} parent=5 // pred_region
      %s261 = ssub.s32 %s13, 1
      %s262 = smul.u32 2, %s23
      %p263 = scmp.lt.s32.totalorder %s22, 1
      %s264 = scalar_select %p263, %s22, 1
      %p265 = scmp.lt.s32.totalorder %s262, 1
      %s266 = scalar_select %p265, %s262, 1
      %s267 = smul.addr %s264, 2
      %s268 = sadd.s32 %s266, %s267
      %s269 = smul.addr %s268, 4
      %s270 = scalar_lea.vmem %s0, %s269
      %p271 = pneg %p53
      %p272 = pneg %p50
      %p273 = pneg %p74
      %p274 = pneg %p71
      %p275 = pneg %p95
      %p276 = pneg %p92
      %p277 = pneg %p116
      %p278 = pneg %p113
      %p279 = pneg %p137
      %p280 = pneg %p134
      %p281 = pneg %p158
      %p282 = pneg %p155
      %p283 = pneg %p179
      %p284 = pneg %p176
      %p285 = pneg %p205
      %p286 = pneg %p202
      %p287 = scmp.lt.s32.totalorder %s22, 1
      %s288 = scalar_select %p287, %s22, 1
      %s289 = smul.addr %s288, 8
      %s290 = smul.addr %s289, 8
      %s291 = scalar_lea.vmem %s7, %s290
      %s292 = smul.u32 2, %s23
      %p293 = scmp.lt.s32.totalorder %s22, 1
      %s294 = scalar_select %p293, %s22, 1
      %p295 = scmp.lt.s32.totalorder %s292, 1
      %s296 = scalar_select %p295, %s292, 1
      %s297 = smul.addr %s294, 2
      %s298 = sadd.s32 %s296, %s297
      %s299 = smul.addr %s298, 4
      %s300 = scalar_lea.vmem %s0, %s299
      %s301 = smul.u32 2, %s23
      %p302 = scmp.lt.s32.totalorder %s22, 1
      %s303 = scalar_select %p302, %s22, 1
      %s304 = smul.addr %s303, 8
      %s305 = smul.addr %s304, 8
      %s306 = scalar_lea.vmem %s7, %s305
      %p308 = scmp.eq.s32.totalorder %s23, 0
      // Predicated region
      $region49: #{tpu_custom_call.1} parent=47 // pred_check
        %p309 = pneg %p308
      $region50: #{tpu_custom_call.1} parent=47 // pred_check_branch
        %311 = sbr.rel (%p309) target = $region52
      $region51: #{tpu_custom_call.1} parent=47 // pred_region
        %vm312 = vcmask 7168
        %313 = vst.msk [vmem:[#allocation2] sm:$0xff] %vm312, 0.0
        %314 = vst.msk [vmem:[#allocation2 + $0x8] sm:$0xff] %vm312, 0.0
        %315 = vst.msk [vmem:[#allocation2 + $0x10] sm:$0xff] %vm312, 0.0
        %316 = vst.msk [vmem:[#allocation2 + $0x18] sm:$0xff] %vm312, 0.0
        %317 = vst.msk [vmem:[#allocation2 + $0x20] sm:$0xff] %vm312, 0.0
        %318 = vst.msk [vmem:[#allocation2 + $0x28] sm:$0xff] %vm312, 0.0
        %319 = vst.msk [vmem:[#allocation2 + $0x30] sm:$0xff] %vm312, 0.0
        %320 = vst.msk [vmem:[#allocation2 + $0x38] sm:$0xff] %vm312, 0.0
      $region52: #{tpu_custom_call.1} parent=47 // pred_fallthru
        _
      %v321 = vld [vmem:[%s300] sm:$0xff]
      %v322 = vld [vmem:[%s1] sm:$0xff]
      %v323 = vld [vmem:[%s1 + $0x8] sm:$0xff]
      %v324 = vld [vmem:[%s1 + $0x10] sm:$0xff]
      %v325 = vld [vmem:[%s1 + $0x18] sm:$0xff]
      %327 = vset.pattern.permute.xlu0 0
      %328 = vperm.xlu0 %327, %v322
      %v329 = vpop.permute.xlu0 %328
      %332 = vset.pattern.permute.xlu0 0
      %333 = vperm.xlu0 %332, %v323
      %v334 = vpop.permute.xlu0 %333
      %337 = vset.pattern.permute.xlu0 0
      %338 = vperm.xlu0 %337, %v324
      %v339 = vpop.permute.xlu0 %338
      %342 = vset.pattern.permute.xlu0 0
      %343 = vperm.xlu0 %342, %v325
      %v344 = vpop.permute.xlu0 %343
      %v347 = vperm.slane %v321, 0
      %v348 = vperm.slane %v321, 4
      %v351 = vperm.slane %v347, 0
      %v352 = vperm.slane %v348, 0
      %v353 = vmul.f32 %v329, %v351
      %v354 = vmul.f32 %v329, %v352
      %v355 = vmul.f32 %v334, %v351
      %v356 = vmul.f32 %v334, %v352
      %v357 = vmul.f32 %v339, %v351
      %v358 = vmul.f32 %v339, %v352
      %v359 = vmul.f32 %v344, %v351
      %v360 = vmul.f32 %v344, %v352
      %361 = vset.pattern.permute.xlu0 1
      %362 = vperm.xlu0 %361, %v322
      %v363 = vpop.permute.xlu0 %362
      %365 = vset.pattern.permute.xlu0 1
      %366 = vperm.xlu0 %365, %v323
      %v367 = vpop.permute.xlu0 %366
      %369 = vset.pattern.permute.xlu0 1
      %370 = vperm.xlu0 %369, %v324
      %v371 = vpop.permute.xlu0 %370
      %373 = vset.pattern.permute.xlu0 1
      %374 = vperm.xlu0 %373, %v325
      %v375 = vpop.permute.xlu0 %374
      %v377 = vperm.slane %v321, 1
      %v378 = vperm.slane %v321, 5
      %v381 = vperm.slane %v377, 1
      %v382 = vperm.slane %v378, 1
      %v383 = vmul.f32 %v363, %v381
      %v384 = vmul.f32 %v363, %v382
      %v385 = vmul.f32 %v367, %v381
      %v386 = vmul.f32 %v367, %v382
      %v387 = vmul.f32 %v371, %v381
      %v388 = vmul.f32 %v371, %v382
      %v389 = vmul.f32 %v375, %v381
      %v390 = vmul.f32 %v375, %v382
      %v391 = vadd.f32 %v353, %v383
      %v392 = vadd.f32 %v354, %v384
      %v393 = vadd.f32 %v355, %v385
      %v394 = vadd.f32 %v356, %v386
      %v395 = vadd.f32 %v357, %v387
      %v396 = vadd.f32 %v358, %v388
      %v397 = vadd.f32 %v359, %v389
      %v398 = vadd.f32 %v360, %v390
      %399 = vset.pattern.permute.xlu0 2
      %400 = vperm.xlu0 %399, %v322
      %v401 = vpop.permute.xlu0 %400
      %403 = vset.pattern.permute.xlu0 2
      %404 = vperm.xlu0 %403, %v323
      %v405 = vpop.permute.xlu0 %404
      %407 = vset.pattern.permute.xlu0 2
      %408 = vperm.xlu0 %407, %v324
      %v409 = vpop.permute.xlu0 %408
      %411 = vset.pattern.permute.xlu0 2
      %412 = vperm.xlu0 %411, %v325
      %v413 = vpop.permute.xlu0 %412
      %v415 = vperm.slane %v321, 2
      %v416 = vperm.slane %v321, 6
      %v419 = vperm.slane %v415, 2
      %v420 = vperm.slane %v416, 2
      %v421 = vmul.f32 %v401, %v419
      %v422 = vmul.f32 %v401, %v420
      %v423 = vmul.f32 %v405, %v419
      %v424 = vmul.f32 %v405, %v420
      %v425 = vmul.f32 %v409, %v419
      %v426 = vmul.f32 %v409, %v420
      %v427 = vmul.f32 %v413, %v419
      %v428 = vmul.f32 %v413, %v420
      %v429 = vadd.f32 %v391, %v421
      %v430 = vadd.f32 %v392, %v422
      %v431 = vadd.f32 %v393, %v423
      %v432 = vadd.f32 %v394, %v424
      %v433 = vadd.f32 %v395, %v425
      %v434 = vadd.f32 %v396, %v426
      %v435 = vadd.f32 %v397, %v427
      %v436 = vadd.f32 %v398, %v428
      %437 = vset.pattern.permute.xlu0 3
      %438 = vperm.xlu0 %437, %v322
      %v439 = vpop.permute.xlu0 %438
      %441 = vset.pattern.permute.xlu0 3
      %442 = vperm.xlu0 %441, %v323
      %v443 = vpop.permute.xlu0 %442
      %445 = vset.pattern.permute.xlu0 3
      %446 = vperm.xlu0 %445, %v324
      %v447 = vpop.permute.xlu0 %446
      %449 = vset.pattern.permute.xlu0 3
      %450 = vperm.xlu0 %449, %v325
      %v451 = vpop.permute.xlu0 %450
      %v453 = vperm.slane %v321, 3
      %v454 = vperm.slane %v321, 7
      %v457 = vperm.slane %v453, 3
      %v458 = vperm.slane %v454, 3
      %v459 = vmul.f32 %v439, %v457
      %v460 = vmul.f32 %v439, %v458
      %v461 = vmul.f32 %v443, %v457
      %v462 = vmul.f32 %v443, %v458
      %v463 = vmul.f32 %v447, %v457
      %v464 = vmul.f32 %v447, %v458
      %v465 = vmul.f32 %v451, %v457
      %v466 = vmul.f32 %v451, %v458
      %v467 = vadd.f32 %v429, %v459
      %v468 = vadd.f32 %v430, %v460
      %v469 = vadd.f32 %v431, %v461
      %v470 = vadd.f32 %v432, %v462
      %v471 = vadd.f32 %v433, %v463
      %v472 = vadd.f32 %v434, %v464
      %v473 = vadd.f32 %v435, %v465
      %v474 = vadd.f32 %v436, %v466
      %v475 = vld [vmem:[%s2] sm:$0xff]
      %v476 = vld [vmem:[%s2 + $0x8] sm:$0xff]
      %v477 = vld [vmem:[%s2 + $0x10] sm:$0xff]
      %v478 = vld [vmem:[%s2 + $0x18] sm:$0xff]
      %480 = vset.pattern.permute.xlu0 0
      %481 = vperm.xlu0 %480, %v475
      %v482 = vpop.permute.xlu0 %481
      %485 = vset.pattern.permute.xlu0 0
      %486 = vperm.xlu0 %485, %v476
      %v487 = vpop.permute.xlu0 %486
      %490 = vset.pattern.permute.xlu0 0
      %491 = vperm.xlu0 %490, %v477
      %v492 = vpop.permute.xlu0 %491
      %495 = vset.pattern.permute.xlu0 0
      %496 = vperm.xlu0 %495, %v478
      %v497 = vpop.permute.xlu0 %496
      %v499 = vmul.f32 %v467, %v482
      %v500 = vmul.f32 %v468, %v482
      %v501 = vmul.f32 %v469, %v487
      %v502 = vmul.f32 %v470, %v487
      %v503 = vmul.f32 %v471, %v492
      %v504 = vmul.f32 %v472, %v492
      %v505 = vmul.f32 %v473, %v497
      %v506 = vmul.f32 %v474, %v497
      %v507 = vld [vmem:[%s3] sm:$0xff]
      %v508 = vld [vmem:[%s3 + $0x8] sm:$0xff]
      %v509 = vld [vmem:[%s3 + $0x10] sm:$0xff]
      %v510 = vld [vmem:[%s3 + $0x18] sm:$0xff]
      %512 = vset.pattern.permute.xlu0 0
      %513 = vperm.xlu0 %512, %v507
      %v514 = vpop.permute.xlu0 %513
      %517 = vset.pattern.permute.xlu0 0
      %518 = vperm.xlu0 %517, %v508
      %v519 = vpop.permute.xlu0 %518
      %522 = vset.pattern.permute.xlu0 0
      %523 = vperm.xlu0 %522, %v509
      %v524 = vpop.permute.xlu0 %523
      %527 = vset.pattern.permute.xlu0 0
      %528 = vperm.xlu0 %527, %v510
      %v529 = vpop.permute.xlu0 %528
      %v531 = vadd.f32 %v499, %v514
      %v532 = vadd.f32 %v500, %v514
      %v533 = vadd.f32 %v501, %v519
      %v534 = vadd.f32 %v502, %v519
      %v535 = vadd.f32 %v503, %v524
      %v536 = vadd.f32 %v504, %v524
      %v537 = vadd.f32 %v505, %v529
      %v538 = vadd.f32 %v506, %v529
      %v539 = vadd.f32 %v531, 3.0
      %v540 = vadd.f32 %v532, 3.0
      %v541 = vadd.f32 %v533, 3.0
      %v542 = vadd.f32 %v534, 3.0
      %v543 = vadd.f32 %v535, 3.0
      %v544 = vadd.f32 %v536, 3.0
      %v545 = vadd.f32 %v537, 3.0
      %v546 = vadd.f32 %v538, 3.0
      %v547 = vmax.f32 %v539, 0.0
      %v548 = vmax.f32 %v540, 0.0
      %v549 = vmax.f32 %v541, 0.0
      %v550 = vmax.f32 %v542, 0.0
      %v551 = vmax.f32 %v543, 0.0
      %v552 = vmax.f32 %v544, 0.0
      %v553 = vmax.f32 %v545, 0.0
      %v554 = vmax.f32 %v546, 0.0
      %v555 = vmin.f32 %v547, 6.0
      %v556 = vmin.f32 %v548, 6.0
      %v557 = vmin.f32 %v549, 6.0
      %v558 = vmin.f32 %v550, 6.0
      %v559 = vmin.f32 %v551, 6.0
      %v560 = vmin.f32 %v552, 6.0
      %v561 = vmin.f32 %v553, 6.0
      %v562 = vmin.f32 %v554, 6.0
      %v563 = vmul.f32 %v531, %v555
      %v564 = vmul.f32 %v532, %v556
      %v565 = vmul.f32 %v533, %v557
      %v566 = vmul.f32 %v534, %v558
      %v567 = vmul.f32 %v535, %v559
      %v568 = vmul.f32 %v536, %v560
      %v569 = vmul.f32 %v537, %v561
      %v570 = vmul.f32 %v538, %v562
      %v571 = vmul.f32 %v563, 0.16666667
      %v572 = vmul.f32 %v564, 0.16666667
      %v573 = vmul.f32 %v565, 0.16666667
      %v574 = vmul.f32 %v566, 0.16666667
      %v575 = vmul.f32 %v567, 0.16666667
      %v576 = vmul.f32 %v568, 0.16666667
      %v577 = vmul.f32 %v569, 0.16666667
      %v578 = vmul.f32 %v570, 0.16666667
      %v579 = vld [vmem:[%s4] sm:$0xf]
      %v580 = vld [vmem:[%s4 + $0x4] sm:$0xf]
      %v581 = vld [vmem:[%s4 + $0x8] sm:$0xf]
      %v582 = vld [vmem:[%s4 + $0xc] sm:$0xf]
      %v583 = vld [vmem:[%s4 + $0x10] sm:$0xf]
      %v584 = vld [vmem:[%s4 + $0x14] sm:$0xf]
      %v585 = vld [vmem:[%s4 + $0x18] sm:$0xf]
      %v586 = vld [vmem:[%s4 + $0x1c] sm:$0xf]
      %v587 = vpack.c.bf16 %v573, %v571
      %v588 = vpack.c.bf16 %v574, %v572
      %v589 = vpack.c.bf16 %v577, %v575
      %v590 = vpack.c.bf16 %v578, %v576
      %v599 = vunpack.c.l.b16 %v579
      %v600 = vunpack.c.l.b16 %v580
      %v601 = vunpack.c.l.b16 %v581
      %v602 = vunpack.c.l.b16 %v582
      %v603 = vunpack.c.l.b16 %v583
      %v604 = vunpack.c.l.b16 %v584
      %v605 = vunpack.c.l.b16 %v585
      %v606 = vunpack.c.l.b16 %v586
      %v607 = vpack.c.b16 %v600, %v599
      %v608 = vpack.c.b16 %v602, %v601
      %v609 = vpack.c.b16 %v604, %v603
      %v610 = vpack.c.b16 %v606, %v605
      %vm611 = vcmask 261120
      %v613 = vsel %vm611, %v607, 0
      %v616 = vsel %vm611, %v608, 0
      %v619 = vsel %vm611, %v609, 0
      %v622 = vsel %vm611, %v610, 0
      %624 = vmatpush.bf16.msra.mxu0 0
      %625 = vmatpush.bf16.msra.mxu0 0
      %626 = vmatpush.bf16.msra.mxu0 0
      %627 = vmatpush.bf16.msra.mxu0 0
      %628 = vmatpush.bf16.msra.mxu0 0
      %629 = vmatpush.bf16.msra.mxu0 0
      %630 = vmatpush.bf16.msra.mxu0 %v589
      %631 = vmatpush.bf16.msra.mxu0 %v587
      %632 = vmatmul.bf16.gmra.mxu0 %v613
      %v633 = vpop.f32.mrf.mxu0
      %v634 = vadd.f32 0.0, %v633
      %v635 = vpop.f32.mrf.mxu0
      %v636 = vadd.f32 0.0, %v635
      %637 = vmatmul.bf16.gmra.mxu0 %v616
      %v638 = vpop.f32.mrf.mxu0
      %v639 = vadd.f32 0.0, %v638
      %v640 = vpop.f32.mrf.mxu0
      %v641 = vadd.f32 0.0, %v640
      %642 = vmatmul.bf16.gmra.mxu0 %v619
      %v643 = vpop.f32.mrf.mxu0
      %v644 = vadd.f32 0.0, %v643
      %v645 = vpop.f32.mrf.mxu0
      %v646 = vadd.f32 0.0, %v645
      %647 = vmatmul.bf16.gmra.mxu0 %v622
      %v648 = vpop.f32.mrf.mxu0
      %v649 = vadd.f32 0.0, %v648
      %v650 = vpop.f32.mrf.mxu0
      %v651 = vadd.f32 0.0, %v650
      %652 = vdwg.mxu0
      %653 = vmatpush.bf16.msra.mxu0 0
      %654 = vmatpush.bf16.msra.mxu0 0
      %655 = vmatpush.bf16.msra.mxu0 0
      %656 = vmatpush.bf16.msra.mxu0 0
      %657 = vmatpush.bf16.msra.mxu0 0
      %658 = vmatpush.bf16.msra.mxu0 0
      %659 = vmatpush.bf16.msra.mxu0 %v590
      %660 = vmatpush.bf16.msra.mxu0 %v588
      %661 = vmatmul.bf16.gmra.mxu0 %v613
      %v662 = vpop.f32.mrf.mxu0
      %v663 = vadd.f32 0.0, %v662
      %v664 = vpop.f32.mrf.mxu0
      %v665 = vadd.f32 0.0, %v664
      %666 = vmatmul.bf16.gmra.mxu0 %v616
      %v667 = vpop.f32.mrf.mxu0
      %v668 = vadd.f32 0.0, %v667
      %v669 = vpop.f32.mrf.mxu0
      %v670 = vadd.f32 0.0, %v669
      %671 = vmatmul.bf16.gmra.mxu0 %v619
      %v672 = vpop.f32.mrf.mxu0
      %v673 = vadd.f32 0.0, %v672
      %v674 = vpop.f32.mrf.mxu0
      %v675 = vadd.f32 0.0, %v674
      %676 = vmatmul.bf16.gmra.mxu0 %v622
      %v677 = vpop.f32.mrf.mxu0
      %v678 = vadd.f32 0.0, %v677
      %v679 = vpop.f32.mrf.mxu0
      %v680 = vadd.f32 0.0, %v679
      %681 = vdwg.mxu0
      %v682 = vld [vmem:[%s5] sm:$0xff]
      %v683 = vld [vmem:[%s5 + $0x8] sm:$0xff]
      %v684 = vld [vmem:[%s5 + $0x10] sm:$0xff]
      %v685 = vld [vmem:[%s5 + $0x18] sm:$0xff]
      %v686 = vld [vmem:[%s5 + $0x20] sm:$0xff]
      %v687 = vld [vmem:[%s5 + $0x28] sm:$0xff]
      %v688 = vld [vmem:[%s5 + $0x30] sm:$0xff]
      %v689 = vld [vmem:[%s5 + $0x38] sm:$0xff]
      %691 = vset.pattern.permute.xlu0 0
      %692 = vperm.xlu0 %691, %v682
      %v693 = vpop.permute.xlu0 %692
      %696 = vset.pattern.permute.xlu0 0
      %697 = vperm.xlu0 %696, %v683
      %v698 = vpop.permute.xlu0 %697
      %701 = vset.pattern.permute.xlu0 0
      %702 = vperm.xlu0 %701, %v684
      %v703 = vpop.permute.xlu0 %702
      %706 = vset.pattern.permute.xlu0 0
      %707 = vperm.xlu0 %706, %v685
      %v708 = vpop.permute.xlu0 %707
      %711 = vset.pattern.permute.xlu0 0
      %712 = vperm.xlu0 %711, %v686
      %v713 = vpop.permute.xlu0 %712
      %716 = vset.pattern.permute.xlu0 0
      %717 = vperm.xlu0 %716, %v687
      %v718 = vpop.permute.xlu0 %717
      %721 = vset.pattern.permute.xlu0 0
      %722 = vperm.xlu0 %721, %v688
      %v723 = vpop.permute.xlu0 %722
      %726 = vset.pattern.permute.xlu0 0
      %727 = vperm.xlu0 %726, %v689
      %v728 = vpop.permute.xlu0 %727
      %v730 = vmul.f32 %v634, %v693
      %v731 = vmul.f32 %v663, %v693
      %v732 = vmul.f32 %v636, %v698
      %v733 = vmul.f32 %v665, %v698
      %v734 = vmul.f32 %v639, %v703
      %v735 = vmul.f32 %v668, %v703
      %v736 = vmul.f32 %v641, %v708
      %v737 = vmul.f32 %v670, %v708
      %v738 = vmul.f32 %v644, %v713
      %v739 = vmul.f32 %v673, %v713
      %v740 = vmul.f32 %v646, %v718
      %v741 = vmul.f32 %v675, %v718
      %v742 = vmul.f32 %v649, %v723
      %v743 = vmul.f32 %v678, %v723
      %v744 = vmul.f32 %v651, %v728
      %v745 = vmul.f32 %v680, %v728
      %v746 = vld [vmem:[%s6] sm:$0xff]
      %v747 = vld [vmem:[%s6 + $0x8] sm:$0xff]
      %v748 = vld [vmem:[%s6 + $0x10] sm:$0xff]
      %v749 = vld [vmem:[%s6 + $0x18] sm:$0xff]
      %v750 = vld [vmem:[%s6 + $0x20] sm:$0xff]
      %v751 = vld [vmem:[%s6 + $0x28] sm:$0xff]
      %v752 = vld [vmem:[%s6 + $0x30] sm:$0xff]
      %v753 = vld [vmem:[%s6 + $0x38] sm:$0xff]
      %755 = vset.pattern.permute.xlu0 0
      %756 = vperm.xlu0 %755, %v746
      %v757 = vpop.permute.xlu0 %756
      %760 = vset.pattern.permute.xlu0 0
      %761 = vperm.xlu0 %760, %v747
      %v762 = vpop.permute.xlu0 %761
      %765 = vset.pattern.permute.xlu0 0
      %766 = vperm.xlu0 %765, %v748
      %v767 = vpop.permute.xlu0 %766
      %770 = vset.pattern.permute.xlu0 0
      %771 = vperm.xlu0 %770, %v749
      %v772 = vpop.permute.xlu0 %771
      %775 = vset.pattern.permute.xlu0 0
      %776 = vperm.xlu0 %775, %v750
      %v777 = vpop.permute.xlu0 %776
      %780 = vset.pattern.permute.xlu0 0
      %781 = vperm.xlu0 %780, %v751
      %v782 = vpop.permute.xlu0 %781
      %785 = vset.pattern.permute.xlu0 0
      %786 = vperm.xlu0 %785, %v752
      %v787 = vpop.permute.xlu0 %786
      %790 = vset.pattern.permute.xlu0 0
      %791 = vperm.xlu0 %790, %v753
      %v792 = vpop.permute.xlu0 %791
      %v794 = vadd.f32 %v730, %v757
      %v795 = vadd.f32 %v731, %v757
      %v796 = vadd.f32 %v732, %v762
      %v797 = vadd.f32 %v733, %v762
      %v798 = vadd.f32 %v734, %v767
      %v799 = vadd.f32 %v735, %v767
      %v800 = vadd.f32 %v736, %v772
      %v801 = vadd.f32 %v737, %v772
      %v802 = vadd.f32 %v738, %v777
      %v803 = vadd.f32 %v739, %v777
      %v804 = vadd.f32 %v740, %v782
      %v805 = vadd.f32 %v741, %v782
      %v806 = vadd.f32 %v742, %v787
      %v807 = vadd.f32 %v743, %v787
      %v808 = vadd.f32 %v744, %v792
      %v809 = vadd.f32 %v745, %v792
      %v810 = vadd.f32 %v794, 3.0
      %v811 = vadd.f32 %v795, 3.0
      %v812 = vadd.f32 %v796, 3.0
      %v813 = vadd.f32 %v797, 3.0
      %v814 = vadd.f32 %v798, 3.0
      %v815 = vadd.f32 %v799, 3.0
      %v816 = vadd.f32 %v800, 3.0
      %v817 = vadd.f32 %v801, 3.0
      %v818 = vadd.f32 %v802, 3.0
      %v819 = vadd.f32 %v803, 3.0
      %v820 = vadd.f32 %v804, 3.0
      %v821 = vadd.f32 %v805, 3.0
      %v822 = vadd.f32 %v806, 3.0
      %v823 = vadd.f32 %v807, 3.0
      %v824 = vadd.f32 %v808, 3.0
      %v825 = vadd.f32 %v809, 3.0
      %v826 = vmax.f32 %v810, 0.0
      %v827 = vmax.f32 %v811, 0.0
      %v828 = vmax.f32 %v812, 0.0
      %v829 = vmax.f32 %v813, 0.0
      %v830 = vmax.f32 %v814, 0.0
      %v831 = vmax.f32 %v815, 0.0
      %v832 = vmax.f32 %v816, 0.0
      %v833 = vmax.f32 %v817, 0.0
      %v834 = vmax.f32 %v818, 0.0
      %v835 = vmax.f32 %v819, 0.0
      %v836 = vmax.f32 %v820, 0.0
      %v837 = vmax.f32 %v821, 0.0
      %v838 = vmax.f32 %v822, 0.0
      %v839 = vmax.f32 %v823, 0.0
      %v840 = vmax.f32 %v824, 0.0
      %v841 = vmax.f32 %v825, 0.0
      %v842 = vmin.f32 %v826, 6.0
      %v843 = vmin.f32 %v827, 6.0
      %v844 = vmin.f32 %v828, 6.0
      %v845 = vmin.f32 %v829, 6.0
      %v846 = vmin.f32 %v830, 6.0
      %v847 = vmin.f32 %v831, 6.0
      %v848 = vmin.f32 %v832, 6.0
      %v849 = vmin.f32 %v833, 6.0
      %v850 = vmin.f32 %v834, 6.0
      %v851 = vmin.f32 %v835, 6.0
      %v852 = vmin.f32 %v836, 6.0
      %v853 = vmin.f32 %v837, 6.0
      %v854 = vmin.f32 %v838, 6.0
      %v855 = vmin.f32 %v839, 6.0
      %v856 = vmin.f32 %v840, 6.0
      %v857 = vmin.f32 %v841, 6.0
      %v858 = vmul.f32 %v794, %v842
      %v859 = vmul.f32 %v795, %v843
      %v860 = vmul.f32 %v796, %v844
      %v861 = vmul.f32 %v797, %v845
      %v862 = vmul.f32 %v798, %v846
      %v863 = vmul.f32 %v799, %v847
      %v864 = vmul.f32 %v800, %v848
      %v865 = vmul.f32 %v801, %v849
      %v866 = vmul.f32 %v802, %v850
      %v867 = vmul.f32 %v803, %v851
      %v868 = vmul.f32 %v804, %v852
      %v869 = vmul.f32 %v805, %v853
      %v870 = vmul.f32 %v806, %v854
      %v871 = vmul.f32 %v807, %v855
      %v872 = vmul.f32 %v808, %v856
      %v873 = vmul.f32 %v809, %v857
      %v874 = vmul.f32 %v858, 0.16666667
      %v875 = vmul.f32 %v859, 0.16666667
      %v876 = vmul.f32 %v860, 0.16666667
      %v877 = vmul.f32 %v861, 0.16666667
      %v878 = vmul.f32 %v862, 0.16666667
      %v879 = vmul.f32 %v863, 0.16666667
      %v880 = vmul.f32 %v864, 0.16666667
      %v881 = vmul.f32 %v865, 0.16666667
      %v882 = vmul.f32 %v866, 0.16666667
      %v883 = vmul.f32 %v867, 0.16666667
      %v884 = vmul.f32 %v868, 0.16666667
      %v885 = vmul.f32 %v869, 0.16666667
      %v886 = vmul.f32 %v870, 0.16666667
      %v887 = vmul.f32 %v871, 0.16666667
      %v888 = vmul.f32 %v872, 0.16666667
      %v889 = vmul.f32 %v873, 0.16666667
      %v890 = vld [vmem:[#allocation2] sm:$0xff]
      %v891 = vld [vmem:[#allocation2 + $0x8] sm:$0xff]
      %v892 = vld [vmem:[#allocation2 + $0x10] sm:$0xff]
      %v893 = vld [vmem:[#allocation2 + $0x18] sm:$0xff]
      %v894 = vld [vmem:[#allocation2 + $0x20] sm:$0xff]
      %v895 = vld [vmem:[#allocation2 + $0x28] sm:$0xff]
      %v896 = vld [vmem:[#allocation2 + $0x30] sm:$0xff]
      %v897 = vld [vmem:[#allocation2 + $0x38] sm:$0xff]
      %v898 = vadd.f32 %v874, %v875
      %899 = vadd.xlane.f32.xlu0 %v898
      %v900 = vpop.xlane.xlu0 %899
      %v901 = vadd.f32 %v876, %v877
      %902 = vadd.xlane.f32.xlu0 %v901
      %v903 = vpop.xlane.xlu0 %902
      %v904 = vadd.f32 %v878, %v879
      %905 = vadd.xlane.f32.xlu0 %v904
      %v906 = vpop.xlane.xlu0 %905
      %v907 = vadd.f32 %v880, %v881
      %908 = vadd.xlane.f32.xlu0 %v907
      %v909 = vpop.xlane.xlu0 %908
      %v910 = vadd.f32 %v882, %v883
      %911 = vadd.xlane.f32.xlu0 %v910
      %v912 = vpop.xlane.xlu0 %911
      %v913 = vadd.f32 %v884, %v885
      %914 = vadd.xlane.f32.xlu0 %v913
      %v915 = vpop.xlane.xlu0 %914
      %v916 = vadd.f32 %v886, %v887
      %917 = vadd.xlane.f32.xlu0 %v916
      %v918 = vpop.xlane.xlu0 %917
      %v919 = vadd.f32 %v888, %v889
      %920 = vadd.xlane.f32.xlu0 %v919
      %v921 = vpop.xlane.xlu0 %920
      %v922 = vadd.f32 %v890, %v900
      %v923 = vadd.f32 %v891, %v903
      %v924 = vadd.f32 %v892, %v906
      %v925 = vadd.f32 %v893, %v909
      %v926 = vadd.f32 %v894, %v912
      %v927 = vadd.f32 %v895, %v915
      %v928 = vadd.f32 %v896, %v918
      %v929 = vadd.f32 %v897, %v921
      %vm930 = vcmask 7168
      %931 = vst.msk [vmem:[#allocation2] sm:$0xff] %vm930, %v922
      %932 = vst.msk [vmem:[#allocation2 + $0x8] sm:$0xff] %vm930, %v923
      %933 = vst.msk [vmem:[#allocation2 + $0x10] sm:$0xff] %vm930, %v924
      %934 = vst.msk [vmem:[#allocation2 + $0x18] sm:$0xff] %vm930, %v925
      %935 = vst.msk [vmem:[#allocation2 + $0x20] sm:$0xff] %vm930, %v926
      %936 = vst.msk [vmem:[#allocation2 + $0x28] sm:$0xff] %vm930, %v927
      %937 = vst.msk [vmem:[#allocation2 + $0x30] sm:$0xff] %vm930, %v928
      %938 = vst.msk [vmem:[#allocation2 + $0x38] sm:$0xff] %vm930, %v929
      // Predicated region
      $region53: #{tpu_custom_call.1} parent=47 // pred_check
        %p939 = pneg %p308
      $region54: #{tpu_custom_call.1} parent=47 // pred_check_branch
        %941 = sbr.rel (%p939) target = $region56
      $region55: #{tpu_custom_call.1} parent=47 // pred_region
        %v942 = vld [vmem:[#allocation2] sm:$0xff]
        %v943 = vld [vmem:[#allocation2 + $0x8] sm:$0xff]
        %v944 = vld [vmem:[#allocation2 + $0x10] sm:$0xff]
        %v945 = vld [vmem:[#allocation2 + $0x18] sm:$0xff]
        %v946 = vld [vmem:[#allocation2 + $0x20] sm:$0xff]
        %v947 = vld [vmem:[#allocation2 + $0x28] sm:$0xff]
        %v948 = vld [vmem:[#allocation2 + $0x30] sm:$0xff]
        %v949 = vld [vmem:[#allocation2 + $0x38] sm:$0xff]
        %v950 = vmul.f32 %v942, 0.00390625
        %v951 = vmul.f32 %v943, 0.00390625
        %v952 = vmul.f32 %v944, 0.00390625
        %v953 = vmul.f32 %v945, 0.00390625
        %v954 = vmul.f32 %v946, 0.00390625
        %v955 = vmul.f32 %v947, 0.00390625
        %v956 = vmul.f32 %v948, 0.00390625
        %v957 = vmul.f32 %v949, 0.00390625
        %958 = vst.msk [vmem:[%s306] sm:$0xff] %vm930, %v950
        %959 = vst.msk [vmem:[%s306 + $0x8] sm:$0xff] %vm930, %v951
        %960 = vst.msk [vmem:[%s306 + $0x10] sm:$0xff] %vm930, %v952
        %961 = vst.msk [vmem:[%s306 + $0x18] sm:$0xff] %vm930, %v953
        %962 = vst.msk [vmem:[%s306 + $0x20] sm:$0xff] %vm930, %v954
        %963 = vst.msk [vmem:[%s306 + $0x28] sm:$0xff] %vm930, %v955
        %964 = vst.msk [vmem:[%s306 + $0x30] sm:$0xff] %vm930, %v956
        %965 = vst.msk [vmem:[%s306 + $0x38] sm:$0xff] %vm930, %v957
      $region56: #{tpu_custom_call.1} parent=47 // pred_fallthru
        _
      %p966 = scmp.lt.s32.totalorder %s22, 1
      %s967 = scalar_select %p966, %s22, 1
      %s968 = smul.addr %s967, 8
      %s969 = smul.addr %s968, 8
      %s970 = scalar_lea.vmem %s7, %s969
      // Predicated region
      $region57: #{tpu_custom_call.1} parent=47 // pred_check
        %p971 = pneg %p202
      $region58: #{tpu_custom_call.1} parent=47 // pred_check_branch
        %973 = sbr.rel (%p971) target = $region60
      $region59: #{tpu_custom_call.1} parent=47 // pred_region
        _
      $region60: #{tpu_custom_call.1} parent=47 // pred_fallthru
        _
    $region48: #{tpu_custom_call.1} parent=5 // pred_fallthru
      _
    %p974 = scmp.le.s32.totalorder 2, %s13
    // Predicated region
    $region61: #{tpu_custom_call.1} parent=5 // pred_check
      %p975 = pneg %p974
    $region62: #{tpu_custom_call.1} parent=5 // pred_check_branch
      %977 = sbr.rel (%p975) target = $region64
    $region63: #{tpu_custom_call.1} parent=5 // pred_region
      %s978 = ssub.s32 %s13, 2
      // Predicated region
      $region65: #{tpu_custom_call.1} parent=63 // pred_check
        %p979 = pneg %p208
      $region66: #{tpu_custom_call.1} parent=63 // pred_check_branch
        %981 = sbr.rel (%p979) target = $region68
      $region67: #{tpu_custom_call.1} parent=63 // pred_region
        %p982 = scmp.lt.s32.totalorder %s24, 1
        %s983 = scalar_select %p982, %s24, 1
        %s984 = smul.addr %s983, 8
        %s985 = smul.addr %s984, 8
        %s986 = scalar_lea.vmem %s7, %s985
      $region68: #{tpu_custom_call.1} parent=63 // pred_fallthru
        _
    $region64: #{tpu_custom_call.1} parent=5 // pred_fallthru
      _
  $region6: #{tpu_custom_call.1} parent=0 // loop_footer
    %s17 = sadd.s32 1, %s13
  $region7: #{tpu_custom_call.1} parent=0 // loop_footer_branch
    %12 = sbr.rel target = $region3
  $region8: #{tpu_custom_call.1} parent=0 // loop_exit
    _

</llo_original>
